<compile_context>
chip_gen: v7x
topology: tpu7x:2x2x1
jax: 0.10.0
libtpu: 0.0.40
codegen_flags: <defaults>
</compile_context>

<pallas_src>
import math
import functools

import jax
import jax.numpy as jnp
from jax import lax
from jax.experimental import pallas as pl
from jax.experimental.pallas import tpu as pltpu

EPS = 1e-5
INV_SQRT2 = 1.0 / math.sqrt(2.0)


# ----------------------------------------------------------------------------
# in-kernel helpers
# ----------------------------------------------------------------------------
def _erf_approx(x):
    # Abramowitz & Stegun 7.1.26, |err| <= 1.5e-7 — matches exact-erf GELU
    # (F.gelu default) far below f32/bf16 matmul noise, lowers on Mosaic.
    a1, a2, a3, a4, a5 = 0.254829592, -0.284496736, 1.421413741, -1.453152027, 1.061405429
    pp = 0.3275911
    sgn = jnp.where(x >= 0.0, 1.0, -1.0)
    ax = jnp.abs(x)
    t = 1.0 / (1.0 + pp * ax)
    poly = ((((a5 * t + a4) * t + a3) * t + a2) * t + a1) * t
    return sgn * (1.0 - poly * jnp.exp(-ax * ax))


def _gelu_exact(x):
    return 0.5 * x * (1.0 + _erf_approx(x * INV_SQRT2))


# ----------------------------------------------------------------------------
# Fused kernel: (depthwise+pointwise conv as one matmul) + bias + LayerNorm + GELU
# ----------------------------------------------------------------------------
def _dwconv_kernel(xcol_ref, w_ref, b_ref, g_ref, bt_ref, o_ref):
    # bf16 x bf16 matmul, f32 accumulation on the MXU
    y = jnp.dot(xcol_ref[...], w_ref[...], preferred_element_type=jnp.float32)
    y = y + b_ref[...]                                      # (tile, C_out) f32
    # LayerNorm over channels (f32 VPU/EUP math)
    mean = jnp.mean(y, axis=-1, keepdims=True)
    var = jnp.mean(jnp.square(y - mean), axis=-1, keepdims=True)
    y = (y - mean) * lax.rsqrt(var + EPS) * g_ref[...] + bt_ref[...]
    o_ref[...] = _gelu_exact(y)


def _pick_row_tile(n_rows):
    """Row tile: multiple of 8, <=256, and >=2 grid steps when possible (v7x has 2 TCs)."""
    if n_rows <= 8:
        return n_rows                      # full-extent block, no (8,128) constraint
    tile = min(256, n_rows)
    if tile == n_rows and n_rows >= 16:
        tile = n_rows // 2                 # keep at least 2 parallel grid steps
    return max(8, (tile // 8) * 8)


def dwconv_subsampling(x, params, *, kernel_size=3, stride=2):
    """x: (B, T, C_in) f32  ->  (B, T_out, C_out) f32."""
    b, t, c_in = x.shape
    pad = kernel_size // 2
    t_out = (t + 2 * pad - kernel_size) // stride + 1

    w_fused = params["w_fused"]            # (K*C_in, C_out) bf16
    b_fused = params["b_fused"]            # (1, C_out) f32
    gamma = params["ln_g"]                 # (1, C_out) f32
    beta = params["ln_b"]                  # (1, C_out) f32
    c_out = w_fused.shape[1]
    kc = kernel_size * c_in

    # im2col with stride/zero-pad in the wrapper (pure layout plumbing):
    # x_col[n, k*C_in + i] = xpad[b, t*stride + k, i]   with n = b*T_out + t
    xpad = jnp.pad(x, ((0, 0), (pad, pad), (0, 0)))
    taps = [xpad[:, k:k + stride * (t_out - 1) + 1:stride, :] for k in range(kernel_size)]
    x_col = jnp.concatenate(taps, axis=-1).reshape(b * t_out, kc).astype(jnp.bfloat16)

    n_rows = b * t_out
    row_tile = _pick_row_tile(n_rows)
    n_pad = pl.cdiv(n_rows, row_tile) * row_tile
    if n_pad != n_rows:
        x_col = jnp.pad(x_col, ((0, n_pad - n_rows), (0, 0)))

    out = pl.pallas_call(
        _dwconv_kernel,
        out_shape=jax.ShapeDtypeStruct((n_pad, c_out), jnp.float32),
        grid_spec=pltpu.PrefetchScalarGridSpec(
            num_scalar_prefetch=0,
            grid=(n_pad // row_tile,),
            in_specs=[
                pl.BlockSpec((row_tile, kc), lambda i: (i, 0)),   # im2col rows
                pl.BlockSpec((kc, c_out), lambda i: (0, 0)),      # fused conv weight
                pl.BlockSpec((1, c_out), lambda i: (0, 0)),       # fused bias
                pl.BlockSpec((1, c_out), lambda i: (0, 0)),       # LN gamma
                pl.BlockSpec((1, c_out), lambda i: (0, 0)),       # LN beta
            ],
            out_specs=pl.BlockSpec((row_tile, c_out), lambda i: (i, 0)),
        ),
        compiler_params=pltpu.CompilerParams(dimension_semantics=("parallel",)),
    )(x_col, w_fused, b_fused, gamma, beta)

    return out[:n_rows].reshape(b, t_out, c_out)


# ----------------------------------------------------------------------------
# Parameter setup: raw torch-layout params + offline folding of the two convs
# ----------------------------------------------------------------------------
def init_raw_params(key, in_channels, out_channels, kernel_size):
    k1, k2, k3, k4, k5, k6 = jax.random.split(key, 6)
    # torch layouts: depthwise (C_out, 1, K); pointwise (C_out, C_out, 1)
    w_dw = jax.random.normal(k1, (out_channels, 1, kernel_size), jnp.float32) * 0.3
    b_dw = jax.random.normal(k2, (out_channels,), jnp.float32) * 0.1
    w_pw = jax.random.normal(k3, (out_channels, out_channels, 1), jnp.float32) * (1.0 / math.sqrt(out_channels))
    b_pw = jax.random.normal(k4, (out_channels,), jnp.float32) * 0.1
    gamma = 1.0 + 0.1 * jax.random.normal(k5, (out_channels,), jnp.float32)
    beta = 0.1 * jax.random.normal(k6, (out_channels,), jnp.float32)
    return dict(w_dw=w_dw, b_dw=b_dw, w_pw=w_pw, b_pw=b_pw, gamma=gamma, beta=beta)


def fold_params(raw, in_channels, kernel_size):
    """Fold depthwise-grouped conv + 1x1 pointwise conv into one (K*C_in, C_out) matmul."""
    w_dw, b_dw, w_pw, b_pw = raw["w_dw"], raw["b_dw"], raw["w_pw"], raw["b_pw"]
    c_out = w_dw.shape[0]
    mult = c_out // in_channels                       # torch grouped-conv: dw out channel o reads input channel o // mult
    onehot = (jnp.arange(in_channels)[:, None] == (jnp.arange(c_out) // mult)[None, :]).astype(jnp.float32)  # (C_in, C_out)
    w_dw2 = w_dw[:, 0, :]                             # (C_out, K)
    w_pw2 = w_pw[:, :, 0]                             # (C_out_p, C_out_o)
    # W_fused[k, i, p] = sum_o onehot[i, o] * w_dw2[o, k] * w_pw2[p, o]
    w_fused = jnp.einsum("io,ok,po->kip", onehot, w_dw2, w_pw2)
    w_fused = w_fused.reshape(kernel_size * in_channels, c_out).astype(jnp.bfloat16)
    b_fused = (b_pw + w_pw2 @ b_dw).reshape(1, c_out).astype(jnp.float32)
    return dict(
        w_fused=w_fused,
        b_fused=b_fused,
        ln_g=raw["gamma"].reshape(1, c_out),
        ln_b=raw["beta"].reshape(1, c_out),
    )


# ----------------------------------------------------------------------------
# Pure-JAX reference (independent path through lax.conv, exact erf GELU)
# ----------------------------------------------------------------------------
def reference(x, raw, *, in_channels, kernel_size, stride):
    pad = kernel_size // 2
    xn = jnp.transpose(x, (0, 2, 1))                                  # (B, C_in, T)
    y = lax.conv_general_dilated(
        xn, raw["w_dw"], window_strides=(stride,), padding=[(pad, pad)],
        dimension_numbers=("NCH", "OIH", "NCH"), feature_group_count=in_channels)
    y = y + raw["b_dw"][None, :, None]
    y = lax.conv_general_dilated(
        y, raw["w_pw"], window_strides=(1,), padding=[(0, 0)],
        dimension_numbers=("NCH", "OIH", "NCH"))
    y = y + raw["b_pw"][None, :, None]
    y = jnp.transpose(y, (0, 2, 1))                                   # (B, T_out, C_out)
    mean = y.mean(-1, keepdims=True)
    var = ((y - mean) ** 2).mean(-1, keepdims=True)
    y = (y - mean) / jnp.sqrt(var + EPS) * raw["gamma"] + raw["beta"]
    return 0.5 * y * (1.0 + jax.scipy.special.erf(y * INV_SQRT2))


if __name__ == "__main__":
    B, T = 2, 32
    C_IN = C_OUT = 128
    KSIZE, STRIDE = 3, 2

    key = jax.random.PRNGKey(0)
    kx, kp = jax.random.split(key)
    x = jax.random.normal(kx, (B, T, C_IN), jnp.float32)

    raw = init_raw_params(kp, C_IN, C_OUT, KSIZE)
    params = fold_params(raw, C_IN, KSIZE)

    fwd = jax.jit(functools.partial(dwconv_subsampling, kernel_size=KSIZE, stride=STRIDE))
    out = jax.block_until_ready(fwd(x, params))

    T_OUT = (T + 2 * (KSIZE // 2) - KSIZE) // STRIDE + 1
    ref = reference(x, raw, in_channels=C_IN, kernel_size=KSIZE, stride=STRIDE)

    assert out.shape == (B, T_OUT, C_OUT), out.shape
    assert jnp.all(jnp.isfinite(out)), "non-finite output"
    err = float(jnp.max(jnp.abs(out - ref)))
    assert err < 5e-2, f"mismatch vs reference, max abs err = {err}"
    print("KERNEL_OK")
</pallas_src>

<mosaic_0001>
module attributes {stable_mosaic.version = 11 : i64} {
  func.func @_dwconv_kernel(%arg0: i32, %arg1: memref<16x384xbf16, #tpu.memory_space<vmem>>, %arg2: memref<384x128xbf16, #tpu.memory_space<vmem>>, %arg3: memref<1x128xf32, #tpu.memory_space<vmem>>, %arg4: memref<1x128xf32, #tpu.memory_space<vmem>>, %arg5: memref<1x128xf32, #tpu.memory_space<vmem>>, %arg6: memref<16x128xf32, #tpu.memory_space<vmem>>) attributes {dimension_semantics = [#tpu.dimension_semantics<parallel>], iteration_bounds = array<i64: 2>, scalar_prefetch = 0 : i64, scratch_operands = 0 : i64, tpu.core_type = #tpu.core_type<tc>, window_params = [{transform_indices = @transform_0, window_bounds = array<i64: 16, 384>}, {pipeline_mode = #tpu.pipeline_mode<synchronous>, transform_indices = @transform_1, window_bounds = array<i64: 384, 128>}, {pipeline_mode = #tpu.pipeline_mode<synchronous>, transform_indices = @transform_2, window_bounds = array<i64: 1, 128>}, {pipeline_mode = #tpu.pipeline_mode<synchronous>, transform_indices = @transform_3, window_bounds = array<i64: 1, 128>}, {pipeline_mode = #tpu.pipeline_mode<synchronous>, transform_indices = @transform_4, window_bounds = array<i64: 1, 128>}, {transform_indices = @transform_5, window_bounds = array<i64: 16, 128>}]} {
    %c0 = arith.constant 0 : index
    %c0_0 = arith.constant 0 : index
    %0 = vector.load %arg1[%c0, %c0_0] : memref<16x384xbf16, #tpu.memory_space<vmem>>, vector<16x384xbf16>
    %c0_1 = arith.constant 0 : index
    %c0_2 = arith.constant 0 : index
    %1 = vector.load %arg2[%c0_1, %c0_2] : memref<384x128xbf16, #tpu.memory_space<vmem>>, vector<384x128xbf16>
    %cst = arith.constant dense<0.000000e+00> : vector<16x128xf32>
    %2 = tpu.matmul %0, %1, %cst {dimension_numbers = #tpu.dot_dimension_numbers<[1], [0], [0], [1], [0, 0, 1, 1], [], []>} : vector<16x384xbf16>, vector<384x128xbf16>, vector<16x128xf32> -> vector<16x128xf32>
    %c0_3 = arith.constant 0 : index
    %c0_4 = arith.constant 0 : index
    %3 = vector.load %arg3[%c0_3, %c0_4] : memref<1x128xf32, #tpu.memory_space<vmem>>, vector<1x128xf32>
    %4 = vector.broadcast %3 : vector<1x128xf32> to vector<16x128xf32>
    %5 = arith.addf %2, %4 : vector<16x128xf32>
    %cst_5 = arith.constant dense<0.000000e+00> : vector<16xf32>
    %6 = vector.multi_reduction <add>, %5, %cst_5 [1] : vector<16x128xf32> to vector<16xf32>
    %7 = vector.shape_cast %6 : vector<16xf32> to vector<16x1xf32>
    %cst_6 = arith.constant 1.280000e+02 : f32
    %8 = vector.broadcast %cst_6 : f32 to vector<16x1xf32>
    %9 = arith.divf %7, %8 : vector<16x1xf32>
    %10 = vector.broadcast %9 : vector<16x1xf32> to vector<16x128xf32>
    %11 = arith.subf %5, %10 : vector<16x128xf32>
    %12 = arith.mulf %11, %11 : vector<16x128xf32>
    %cst_7 = arith.constant dense<0.000000e+00> : vector<16xf32>
    %13 = vector.multi_reduction <add>, %12, %cst_7 [1] : vector<16x128xf32> to vector<16xf32>
    %14 = vector.shape_cast %13 : vector<16xf32> to vector<16x1xf32>
    %cst_8 = arith.constant 1.280000e+02 : f32
    %15 = vector.broadcast %cst_8 : f32 to vector<16x1xf32>
    %16 = arith.divf %14, %15 : vector<16x1xf32>
    %17 = vector.broadcast %9 : vector<16x1xf32> to vector<16x128xf32>
    %18 = arith.subf %5, %17 : vector<16x128xf32>
    %cst_9 = arith.constant 9.99999974E-6 : f32
    %19 = vector.broadcast %cst_9 : f32 to vector<16x1xf32>
    %20 = arith.addf %16, %19 : vector<16x1xf32>
    %21 = math.rsqrt %20 : vector<16x1xf32>
    %22 = vector.broadcast %21 : vector<16x1xf32> to vector<16x128xf32>
    %23 = arith.mulf %18, %22 : vector<16x128xf32>
    %c0_10 = arith.constant 0 : index
    %c0_11 = arith.constant 0 : index
    %24 = vector.load %arg4[%c0_10, %c0_11] : memref<1x128xf32, #tpu.memory_space<vmem>>, vector<1x128xf32>
    %25 = vector.broadcast %24 : vector<1x128xf32> to vector<16x128xf32>
    %26 = arith.mulf %23, %25 : vector<16x128xf32>
    %c0_12 = arith.constant 0 : index
    %c0_13 = arith.constant 0 : index
    %27 = vector.load %arg5[%c0_12, %c0_13] : memref<1x128xf32, #tpu.memory_space<vmem>>, vector<1x128xf32>
    %28 = vector.broadcast %27 : vector<1x128xf32> to vector<16x128xf32>
    %29 = arith.addf %26, %28 : vector<16x128xf32>
    %cst_14 = arith.constant 5.000000e-01 : f32
    %30 = vector.broadcast %cst_14 : f32 to vector<16x128xf32>
    %31 = arith.mulf %30, %29 : vector<16x128xf32>
    %cst_15 = arith.constant 0.707106769 : f32
    %32 = vector.broadcast %cst_15 : f32 to vector<16x128xf32>
    %33 = arith.mulf %29, %32 : vector<16x128xf32>
    %cst_16 = arith.constant 0.000000e+00 : f32
    %34 = vector.broadcast %cst_16 : f32 to vector<16x128xf32>
    %35 = arith.cmpf oge, %33, %34 : vector<16x128xf32>
    %cst_17 = arith.constant 1.000000e+00 : f32
    %cst_18 = arith.constant -1.000000e+00 : f32
    %36 = vector.broadcast %cst_17 : f32 to vector<16x128xf32>
    %37 = vector.broadcast %cst_18 : f32 to vector<16x128xf32>
    %38 = arith.select %35, %36, %37 : vector<16x128xi1>, vector<16x128xf32>
    %39 = math.absf %33 : vector<16x128xf32>
    %cst_19 = arith.constant 0.327591091 : f32
    %40 = vector.broadcast %cst_19 : f32 to vector<16x128xf32>
    %41 = arith.mulf %40, %39 : vector<16x128xf32>
    %cst_20 = arith.constant 1.000000e+00 : f32
    %42 = vector.broadcast %cst_20 : f32 to vector<16x128xf32>
    %43 = arith.addf %42, %41 : vector<16x128xf32>
    %cst_21 = arith.constant 1.000000e+00 : f32
    %44 = vector.broadcast %cst_21 : f32 to vector<16x128xf32>
    %45 = arith.divf %44, %43 : vector<16x128xf32>
    %cst_22 = arith.constant 1.06140542 : f32
    %46 = vector.broadcast %cst_22 : f32 to vector<16x128xf32>
    %47 = arith.mulf %46, %45 : vector<16x128xf32>
    %cst_23 = arith.constant -1.45315206 : f32
    %48 = vector.broadcast %cst_23 : f32 to vector<16x128xf32>
    %49 = arith.addf %47, %48 : vector<16x128xf32>
    %50 = arith.mulf %49, %45 : vector<16x128xf32>
    %cst_24 = arith.constant 1.42141378 : f32
    %51 = vector.broadcast %cst_24 : f32 to vector<16x128xf32>
    %52 = arith.addf %50, %51 : vector<16x128xf32>
    %53 = arith.mulf %52, %45 : vector<16x128xf32>
    %cst_25 = arith.constant -0.284496725 : f32
    %54 = vector.broadcast %cst_25 : f32 to vector<16x128xf32>
    %55 = arith.addf %53, %54 : vector<16x128xf32>
    %56 = arith.mulf %55, %45 : vector<16x128xf32>
    %cst_26 = arith.constant 0.254829586 : f32
    %57 = vector.broadcast %cst_26 : f32 to vector<16x128xf32>
    %58 = arith.addf %56, %57 : vector<16x128xf32>
    %59 = arith.mulf %58, %45 : vector<16x128xf32>
    %cst_27 = arith.constant 0.000000e+00 : f32
    %60 = vector.broadcast %cst_27 : f32 to vector<16x128xf32>
    %61 = arith.subf %60, %39 : vector<16x128xf32>
    %62 = arith.mulf %61, %39 : vector<16x128xf32>
    %63 = math.exp %62 : vector<16x128xf32>
    %64 = arith.mulf %59, %63 : vector<16x128xf32>
    %cst_28 = arith.constant 1.000000e+00 : f32
    %65 = vector.broadcast %cst_28 : f32 to vector<16x128xf32>
    %66 = arith.subf %65, %64 : vector<16x128xf32>
    %67 = arith.mulf %38, %66 : vector<16x128xf32>
    %cst_29 = arith.constant 1.000000e+00 : f32
    %68 = vector.broadcast %cst_29 : f32 to vector<16x128xf32>
    %69 = arith.addf %68, %67 : vector<16x128xf32>
    %70 = arith.mulf %31, %69 : vector<16x128xf32>
    %c0_30 = arith.constant 0 : index
    %c0_31 = arith.constant 0 : index
    %71 = vector.load %arg6[%c0_30, %c0_31] : memref<16x128xf32, #tpu.memory_space<vmem>>, vector<16x128xf32>
    tpu.vector_store %arg6[%c0_30, %c0_31], %70 {strides = array<i32>} : memref<16x128xf32, #tpu.memory_space<vmem>>, vector<16x128xf32>,
    return
  }
  func.func @transform_0(%arg0: i32) -> (i32, i32) {
    %c0_i32 = arith.constant 0 : i32
    %c0_i32_0 = arith.constant 0 : i32
    return %arg0, %c0_i32 : i32, i32
  }
  func.func @transform_1(%arg0: i32) -> (i32, i32) {
    %c0_i32 = arith.constant 0 : i32
    %c0_i32_0 = arith.constant 0 : i32
    %c0_i32_1 = arith.constant 0 : i32
    return %c0_i32, %c0_i32_0 : i32, i32
  }
  func.func @transform_2(%arg0: i32) -> (i32, i32) {
    %c0_i32 = arith.constant 0 : i32
    %c0_i32_0 = arith.constant 0 : i32
    %c0_i32_1 = arith.constant 0 : i32
    return %c0_i32, %c0_i32_0 : i32, i32
  }
  func.func @transform_3(%arg0: i32) -> (i32, i32) {
    %c0_i32 = arith.constant 0 : i32
    %c0_i32_0 = arith.constant 0 : i32
    %c0_i32_1 = arith.constant 0 : i32
    return %c0_i32, %c0_i32_0 : i32, i32
  }
  func.func @transform_4(%arg0: i32) -> (i32, i32) {
    %c0_i32 = arith.constant 0 : i32
    %c0_i32_0 = arith.constant 0 : i32
    %c0_i32_1 = arith.constant 0 : i32
    return %c0_i32, %c0_i32_0 : i32, i32
  }
  func.func @transform_5(%arg0: i32) -> (i32, i32) {
    %c0_i32 = arith.constant 0 : i32
    %c0_i32_0 = arith.constant 0 : i32
    return %arg0, %c0_i32 : i32, i32
  }
}

</mosaic_0001>

<llo_original>
// kernel: dwconv_subsampling.1
$region0: #{dwconv_subsampling.1}
  #allocation0 [shape = 'u32[]', space=smem, size = 0x4, offset = 0x4, fixed_abs, tag = 'smem constant byte address 0x4 - core index']
  #allocation1 [shape = 'u32[144,128]{1,0:T(1,128)}', space=vmem, size = 0x12000, scoped, tag = 'internal scratch']
  %s0 = inlined_call_operand.vmem [shape: bf16[32,384], index: 0, kind: input, shape index: {}]
  %s1 = inlined_call_operand.vmem [shape: bf16[384,128], index: 1, kind: input, shape index: {}]
  %s2 = inlined_call_operand.vmem [shape: f32[1,128], index: 2, kind: input, shape index: {}]
  %s3 = inlined_call_operand.vmem [shape: f32[1,128], index: 3, kind: input, shape index: {}]
  %s4 = inlined_call_operand.vmem [shape: f32[1,128], index: 4, kind: input, shape index: {}]
  %s5 = inlined_call_operand.hbm [shape: f32[32,128], index: 5, kind: output, shape index: {}]
  %s6 = sld [smem:[#allocation0]]
  $region53: #{dwconv_subsampling.1} parent=0
    _
  %s8 = ssub.s32 1, %s6
  %s9 = scalar_select 0, %s8, %s6
  $region1: #{dwconv_subsampling.1} parent=0
    #allocation2 [shape = 'u8[16384]{0}', space=vmem, size = 0x4000, scoped, tag = 'output window, operand 0']
    #allocation3 [shape = 's32[2]{0}', space=sflag, size = 0x8, scoped, tag = 'scoped memory for dwconv_subsampling.1']
    %10 = vsyncpa [#allocation3], 0
    %s11 = scalar_lea.sflag [#allocation3], 1
    %12 = vsyncpa %s11, 0
    loop: start=0, step=1, limit=4
    $region2: #{dwconv_subsampling.1} parent=1 // loop_pre_header
      _
    $region3: #{dwconv_subsampling.1} parent=1 // loop_header
      %s14 = sphi 0, %s18
      %p15 = scmp.ge.s32.totalorder %s14, 4
      %s24 = sphi 0, %s26
      %s27 = sphi 0, %s24
      %s28 = sphi 0, %s27
      %s44 = sphi 0, %s28
      %s48 = sphi 0, %s48
      %s50 = sphi 0, %s48
      %s51 = sphi 0, %s50
      %s65 = sphi 0, %s51
      %s69 = sphi 0, %s69
      %s71 = sphi 0, %s69
      %s72 = sphi 0, %s71
      %s86 = sphi 0, %s72
      %s90 = sphi 0, %s90
      %s92 = sphi 0, %s90
      %s93 = sphi 0, %s92
      %s107 = sphi 0, %s93
      %s111 = sphi 0, %s111
      %s113 = sphi 0, %s111
      %s114 = sphi 0, %s113
      %s128 = sphi 0, %s114
      %s134 = sphi 0, %s136
      %s137 = sphi 0, %s134
      %s138 = sphi 0, %s137
      %s154 = sphi 0, %s138
    $region4: #{dwconv_subsampling.1} parent=1 // loop_header_branch
      %17 = sbr.rel (%p15) target = $region8
    $region5: #{dwconv_subsampling.1} parent=1 // loop_body
      %s19 = ssub.s32 %s14, 1
      %s20 = ssub.s32 %s14, 2
      %s21 = sadd.s32 %s14, 1
      %s22 = ssub.s32 %s14, %s21
      %p23 = scmp.eq.s32.totalorder %s22, 0
      %s25 = sadd.s32 %s24, 1
      %s26 = scalar_select %p23, %s24, %s25
      %p29 = pneg %p23
      %p30 = scmp.eq.s32.totalorder %s14, 1
      %p31 = por %p29, %p30
      %p32 = scmp.ne.s32.totalorder %s24, %s27
      %p33 = scmp.eq.s32.totalorder %s14, 0
      %p34 = por %p32, %p33
      %p35 = scmp.ne.s32.totalorder %s24, %s27
      %p36 = scmp.eq.s32.totalorder %s19, 1
      %p37 = por %p35, %p36
      %p38 = scmp.ne.s32.totalorder %s27, %s28
      %p39 = scmp.eq.s32.totalorder %s19, 0
      %p40 = por %p38, %p39
      %p41 = scmp.ne.s32.totalorder %s27, %s28
      %p42 = scmp.eq.s32.totalorder %s20, 1
      %p43 = por %p41, %p42
      %p45 = scmp.ne.s32.totalorder %s28, %s44
      %p46 = scmp.eq.s32.totalorder %s20, 0
      %p47 = por %p45, %p46
      %s49 = sadd.s32 %s48, 1
      %p52 = scmp.eq.s32.totalorder %s14, 1
      %p53 = scmp.ne.s32.totalorder %s48, %s50
      %p54 = scmp.eq.s32.totalorder %s14, 0
      %p55 = por %p53, %p54
      %p56 = scmp.ne.s32.totalorder %s48, %s50
      %p57 = scmp.eq.s32.totalorder %s19, 1
      %p58 = por %p56, %p57
      %p59 = scmp.ne.s32.totalorder %s50, %s51
      %p60 = scmp.eq.s32.totalorder %s19, 0
      %p61 = por %p59, %p60
      %p62 = scmp.ne.s32.totalorder %s50, %s51
      %p63 = scmp.eq.s32.totalorder %s20, 1
      %p64 = por %p62, %p63
      %p66 = scmp.ne.s32.totalorder %s51, %s65
      %p67 = scmp.eq.s32.totalorder %s20, 0
      %p68 = por %p66, %p67
      %s70 = sadd.s32 %s69, 1
      %p73 = scmp.eq.s32.totalorder %s14, 1
      %p74 = scmp.ne.s32.totalorder %s69, %s71
      %p75 = scmp.eq.s32.totalorder %s14, 0
      %p76 = por %p74, %p75
      %p77 = scmp.ne.s32.totalorder %s69, %s71
      %p78 = scmp.eq.s32.totalorder %s19, 1
      %p79 = por %p77, %p78
      %p80 = scmp.ne.s32.totalorder %s71, %s72
      %p81 = scmp.eq.s32.totalorder %s19, 0
      %p82 = por %p80, %p81
      %p83 = scmp.ne.s32.totalorder %s71, %s72
      %p84 = scmp.eq.s32.totalorder %s20, 1
      %p85 = por %p83, %p84
      %p87 = scmp.ne.s32.totalorder %s72, %s86
      %p88 = scmp.eq.s32.totalorder %s20, 0
      %p89 = por %p87, %p88
      %s91 = sadd.s32 %s90, 1
      %p94 = scmp.eq.s32.totalorder %s14, 1
      %p95 = scmp.ne.s32.totalorder %s90, %s92
      %p96 = scmp.eq.s32.totalorder %s14, 0
      %p97 = por %p95, %p96
      %p98 = scmp.ne.s32.totalorder %s90, %s92
      %p99 = scmp.eq.s32.totalorder %s19, 1
      %p100 = por %p98, %p99
      %p101 = scmp.ne.s32.totalorder %s92, %s93
      %p102 = scmp.eq.s32.totalorder %s19, 0
      %p103 = por %p101, %p102
      %p104 = scmp.ne.s32.totalorder %s92, %s93
      %p105 = scmp.eq.s32.totalorder %s20, 1
      %p106 = por %p104, %p105
      %p108 = scmp.ne.s32.totalorder %s93, %s107
      %p109 = scmp.eq.s32.totalorder %s20, 0
      %p110 = por %p108, %p109
      %s112 = sadd.s32 %s111, 1
      %p115 = scmp.eq.s32.totalorder %s14, 1
      %p116 = scmp.ne.s32.totalorder %s111, %s113
      %p117 = scmp.eq.s32.totalorder %s14, 0
      %p118 = por %p116, %p117
      %p119 = scmp.ne.s32.totalorder %s111, %s113
      %p120 = scmp.eq.s32.totalorder %s19, 1
      %p121 = por %p119, %p120
      %p122 = scmp.ne.s32.totalorder %s113, %s114
      %p123 = scmp.eq.s32.totalorder %s19, 0
      %p124 = por %p122, %p123
      %p125 = scmp.ne.s32.totalorder %s113, %s114
      %p126 = scmp.eq.s32.totalorder %s20, 1
      %p127 = por %p125, %p126
      %p129 = scmp.ne.s32.totalorder %s114, %s128
      %p130 = scmp.eq.s32.totalorder %s20, 0
      %p131 = por %p129, %p130
      %s132 = ssub.s32 %s14, %s21
      %p133 = scmp.eq.s32.totalorder %s132, 0
      %s135 = sadd.s32 %s134, 1
      %s136 = scalar_select %p133, %s134, %s135
      %p139 = pneg %p133
      %p140 = scmp.eq.s32.totalorder %s14, 1
      %p141 = por %p139, %p140
      %p142 = scmp.ne.s32.totalorder %s134, %s137
      %p143 = scmp.eq.s32.totalorder %s14, 0
      %p144 = por %p142, %p143
      %p145 = scmp.ne.s32.totalorder %s134, %s137
      %p146 = scmp.eq.s32.totalorder %s19, 1
      %p147 = por %p145, %p146
      %p148 = scmp.ne.s32.totalorder %s137, %s138
      %p149 = scmp.eq.s32.totalorder %s19, 0
      %p150 = por %p148, %p149
      %p151 = scmp.ne.s32.totalorder %s137, %s138
      %p152 = scmp.eq.s32.totalorder %s20, 1
      %p153 = por %p151, %p152
      %p155 = scmp.ne.s32.totalorder %s138, %s154
      %p156 = scmp.eq.s32.totalorder %s20, 0
      %p157 = por %p155, %p156
      %p158 = scmp.le.s32.totalorder 1, %s14
      %p159 = scmp.lt.s32.totalorder %s14, 3
      %p160 = pnand %p158, %p159
      %p161 = pneg %p160
      // Predicated region
      $region9: #{dwconv_subsampling.1} parent=5 // pred_check
        _
      $region10: #{dwconv_subsampling.1} parent=5 // pred_check_branch
        %163 = sbr.rel (%p160) target = $region12
      $region11: #{dwconv_subsampling.1} parent=5 // pred_region
        %s164 = ssub.s32 %s14, 1
        // Predicated region
        $region13: #{dwconv_subsampling.1} parent=11 // pred_check
          %p165 = pneg %p61
        $region14: #{dwconv_subsampling.1} parent=11 // pred_check_branch
          %167 = sbr.rel (%p165) target = $region16
        $region15: #{dwconv_subsampling.1} parent=11 // pred_region
          _
        $region16: #{dwconv_subsampling.1} parent=11 // pred_fallthru
          _
        // Predicated region
        $region17: #{dwconv_subsampling.1} parent=11 // pred_check
          %p168 = pneg %p82
        $region18: #{dwconv_subsampling.1} parent=11 // pred_check_branch
          %170 = sbr.rel (%p168) target = $region20
        $region19: #{dwconv_subsampling.1} parent=11 // pred_region
          _
        $region20: #{dwconv_subsampling.1} parent=11 // pred_fallthru
          _
        // Predicated region
        $region21: #{dwconv_subsampling.1} parent=11 // pred_check
          %p171 = pneg %p103
        $region22: #{dwconv_subsampling.1} parent=11 // pred_check_branch
          %173 = sbr.rel (%p171) target = $region24
        $region23: #{dwconv_subsampling.1} parent=11 // pred_region
          _
        $region24: #{dwconv_subsampling.1} parent=11 // pred_fallthru
          _
        // Predicated region
        $region25: #{dwconv_subsampling.1} parent=11 // pred_check
          %p174 = pneg %p124
        $region26: #{dwconv_subsampling.1} parent=11 // pred_check_branch
          %176 = sbr.rel (%p174) target = $region28
        $region27: #{dwconv_subsampling.1} parent=11 // pred_region
          _
        $region28: #{dwconv_subsampling.1} parent=11 // pred_fallthru
          _
      $region12: #{dwconv_subsampling.1} parent=5 // pred_fallthru
        _
      %p177 = scmp.lt.s32.totalorder %s14, 2
      // Predicated region
      $region29: #{dwconv_subsampling.1} parent=5 // pred_check
        %p178 = pneg %p177
      $region30: #{dwconv_subsampling.1} parent=5 // pred_check_branch
        %180 = sbr.rel (%p178) target = $region32
      $region31: #{dwconv_subsampling.1} parent=5 // pred_region
        // Predicated region
        $region33: #{dwconv_subsampling.1} parent=31 // pred_check
          %p181 = pneg %p34
        $region34: #{dwconv_subsampling.1} parent=31 // pred_check_branch
          %183 = sbr.rel (%p181) target = $region36
        $region35: #{dwconv_subsampling.1} parent=31 // pred_region
          %s184 = smul.u32 2, %s14
          %p185 = scmp.lt.s32.totalorder %s184, 3
          %s186 = scalar_select %p185, %s184, 3
          %s187 = smul.addr %s186, 3
          %s188 = smul.addr %s187, 4
          %s189 = scalar_lea.vmem %s0, %s188
          %s190 = smul.u32 2, %s14
        $region36: #{dwconv_subsampling.1} parent=31 // pred_fallthru
          _
      $region32: #{dwconv_subsampling.1} parent=5 // pred_fallthru
        _
      %p191 = scmp.le.s32.totalorder 1, %s14
      %p192 = scmp.lt.s32.totalorder %s14, 3
      %p193 = pnand %p191, %p192
      %p194 = pneg %p193
      // Predicated region
      $region37: #{dwconv_subsampling.1} parent=5 // pred_check
        _
      $region38: #{dwconv_subsampling.1} parent=5 // pred_check_branch
        %196 = sbr.rel (%p193) target = $region40
      $region39: #{dwconv_subsampling.1} parent=5 // pred_region
        %s197 = ssub.s32 %s14, 1
        %s198 = smul.u32 2, %s19
        %p199 = scmp.lt.s32.totalorder %s198, 3
        %s200 = scalar_select %p199, %s198, 3
        %s201 = smul.addr %s200, 3
        %s202 = smul.addr %s201, 4
        %s203 = scalar_lea.vmem %s0, %s202
        %p204 = pneg %p40
        %p205 = pneg %p37
        %p206 = pneg %p61
        %p207 = pneg %p58
        %p208 = pneg %p82
        %p209 = pneg %p79
        %p210 = pneg %p103
        %p211 = pneg %p100
        %p212 = pneg %p124
        %p213 = pneg %p121
        %p214 = pneg %p150
        %p215 = pneg %p147
        %s216 = sand.u32 %s137, 1
        %s217 = scalar_lea.sflag [#allocation3], %s216
        %s218 = sand.u32 %s137, 1
        %s219 = smul.addr %s218, 16
        %s220 = scalar_lea.vmem [#allocation2], %s219
        %s221 = smul.u32 2, %s19
        %p222 = scmp.lt.s32.totalorder %s221, 3
        %s223 = scalar_select %p222, %s221, 3
        %s224 = smul.addr %s223, 3
        %s225 = smul.addr %s224, 4
        %s226 = scalar_lea.vmem %s0, %s225
        %s227 = smul.u32 2, %s19
        %s228 = smul.u32 2, %s19
        %v230 = vld [vmem:[%s226] sm:$0xff]
        %v231 = vld [vmem:[%s226 + $0x8] sm:$0xf]
        %v232 = vld [vmem:[%s226 + $0xc] sm:$0xff]
        %v233 = vld [vmem:[%s226 + $0x14] sm:$0xf]
        %v234 = vld [vmem:[%s1] sm:$0xf]
        %v235 = vld [vmem:[%s1 + $0x4] sm:$0xf]
        %v236 = vld [vmem:[%s1 + $0x8] sm:$0xf]
        %v237 = vld [vmem:[%s1 + $0xc] sm:$0xf]
        %v238 = vld [vmem:[%s1 + $0x10] sm:$0xf]
        %v239 = vld [vmem:[%s1 + $0x14] sm:$0xf]
        %v240 = vld [vmem:[%s1 + $0x18] sm:$0xf]
        %v241 = vld [vmem:[%s1 + $0x1c] sm:$0xf]
        %v242 = vld [vmem:[%s1 + $0x20] sm:$0xf]
        %v243 = vld [vmem:[%s1 + $0x24] sm:$0xf]
        %v244 = vld [vmem:[%s1 + $0x28] sm:$0xf]
        %v245 = vld [vmem:[%s1 + $0x2c] sm:$0xf]
        %v246 = vld [vmem:[%s1 + $0x30] sm:$0xf]
        %v247 = vld [vmem:[%s1 + $0x34] sm:$0xf]
        %v248 = vld [vmem:[%s1 + $0x38] sm:$0xf]
        %v249 = vld [vmem:[%s1 + $0x3c] sm:$0xf]
        %v250 = vld [vmem:[%s1 + $0x40] sm:$0xf]
        %v251 = vld [vmem:[%s1 + $0x44] sm:$0xf]
        %v252 = vld [vmem:[%s1 + $0x48] sm:$0xf]
        %v253 = vld [vmem:[%s1 + $0x4c] sm:$0xf]
        %v254 = vld [vmem:[%s1 + $0x50] sm:$0xf]
        %v255 = vld [vmem:[%s1 + $0x54] sm:$0xf]
        %v256 = vld [vmem:[%s1 + $0x58] sm:$0xf]
        %v257 = vld [vmem:[%s1 + $0x5c] sm:$0xf]
        %v258 = vld [vmem:[%s1 + $0x60] sm:$0xf]
        %v259 = vld [vmem:[%s1 + $0x64] sm:$0xf]
        %v260 = vld [vmem:[%s1 + $0x68] sm:$0xf]
        %v261 = vld [vmem:[%s1 + $0x6c] sm:$0xf]
        %v262 = vld [vmem:[%s1 + $0x70] sm:$0xf]
        %v263 = vld [vmem:[%s1 + $0x74] sm:$0xf]
        %v264 = vld [vmem:[%s1 + $0x78] sm:$0xf]
        %v265 = vld [vmem:[%s1 + $0x7c] sm:$0xf]
        %v266 = vld [vmem:[%s1 + $0x80] sm:$0xf]
        %v267 = vld [vmem:[%s1 + $0x84] sm:$0xf]
        %v268 = vld [vmem:[%s1 + $0x88] sm:$0xf]
        %v269 = vld [vmem:[%s1 + $0x8c] sm:$0xf]
        %v270 = vld [vmem:[%s1 + $0x90] sm:$0xf]
        %v271 = vld [vmem:[%s1 + $0x94] sm:$0xf]
        %v272 = vld [vmem:[%s1 + $0x98] sm:$0xf]
        %v273 = vld [vmem:[%s1 + $0x9c] sm:$0xf]
        %v274 = vld [vmem:[%s1 + $0xa0] sm:$0xf]
        %v275 = vld [vmem:[%s1 + $0xa4] sm:$0xf]
        %v276 = vld [vmem:[%s1 + $0xa8] sm:$0xf]
        %v277 = vld [vmem:[%s1 + $0xac] sm:$0xf]
        %v278 = vld [vmem:[%s1 + $0xb0] sm:$0xf]
        %v279 = vld [vmem:[%s1 + $0xb4] sm:$0xf]
        %v280 = vld [vmem:[%s1 + $0xb8] sm:$0xf]
        %v281 = vld [vmem:[%s1 + $0xbc] sm:$0xf]
        %v282 = vld [vmem:[%s2] sm:$0x1]
        %v284 = vlaneseq
        %v285 = vshrl.u32 %v284, 7
        %v286 = vsub.s32 0, %v285
        %v287 = vrot.slane %v282, %v286
        %v293 = vunpack.c.l.b16 %v230
        %v294 = vunpack.c.h.b16 %v230
        %v295 = vunpack.c.l.b16 %v231
        %v296 = vunpack.c.l.b16 %v232
        %v297 = vunpack.c.h.b16 %v232
        %v298 = vunpack.c.l.b16 %v233
        %v299 = vpack.c.b16 %v296, %v293
        %v300 = vpack.c.b16 %v297, %v294
        %v301 = vpack.c.b16 %v298, %v295
        %v353 = vunpack.c.l.b16 %v234
        %v354 = vunpack.c.l.b16 %v235
        %v355 = vunpack.c.l.b16 %v236
        %v356 = vunpack.c.l.b16 %v237
        %v357 = vunpack.c.l.b16 %v238
        %v358 = vunpack.c.l.b16 %v239
        %v359 = vunpack.c.l.b16 %v240
        %v360 = vunpack.c.l.b16 %v241
        %v361 = vunpack.c.l.b16 %v242
        %v362 = vunpack.c.l.b16 %v243
        %v363 = vunpack.c.l.b16 %v244
        %v364 = vunpack.c.l.b16 %v245
        %v365 = vunpack.c.l.b16 %v246
        %v366 = vunpack.c.l.b16 %v247
        %v367 = vunpack.c.l.b16 %v248
        %v368 = vunpack.c.l.b16 %v249
        %v369 = vunpack.c.l.b16 %v250
        %v370 = vunpack.c.l.b16 %v251
        %v371 = vunpack.c.l.b16 %v252
        %v372 = vunpack.c.l.b16 %v253
        %v373 = vunpack.c.l.b16 %v254
        %v374 = vunpack.c.l.b16 %v255
        %v375 = vunpack.c.l.b16 %v256
        %v376 = vunpack.c.l.b16 %v257
        %v377 = vunpack.c.l.b16 %v258
        %v378 = vunpack.c.l.b16 %v259
        %v379 = vunpack.c.l.b16 %v260
        %v380 = vunpack.c.l.b16 %v261
        %v381 = vunpack.c.l.b16 %v262
        %v382 = vunpack.c.l.b16 %v263
        %v383 = vunpack.c.l.b16 %v264
        %v384 = vunpack.c.l.b16 %v265
        %v385 = vunpack.c.l.b16 %v266
        %v386 = vunpack.c.l.b16 %v267
        %v387 = vunpack.c.l.b16 %v268
        %v388 = vunpack.c.l.b16 %v269
        %v389 = vunpack.c.l.b16 %v270
        %v390 = vunpack.c.l.b16 %v271
        %v391 = vunpack.c.l.b16 %v272
        %v392 = vunpack.c.l.b16 %v273
        %v393 = vunpack.c.l.b16 %v274
        %v394 = vunpack.c.l.b16 %v275
        %v395 = vunpack.c.l.b16 %v276
        %v396 = vunpack.c.l.b16 %v277
        %v397 = vunpack.c.l.b16 %v278
        %v398 = vunpack.c.l.b16 %v279
        %v399 = vunpack.c.l.b16 %v280
        %v400 = vunpack.c.l.b16 %v281
        %v401 = vpack.c.b16 %v354, %v353
        %v402 = vpack.c.b16 %v356, %v355
        %v403 = vpack.c.b16 %v358, %v357
        %v404 = vpack.c.b16 %v360, %v359
        %v405 = vpack.c.b16 %v362, %v361
        %v406 = vpack.c.b16 %v364, %v363
        %v407 = vpack.c.b16 %v366, %v365
        %v408 = vpack.c.b16 %v368, %v367
        %v409 = vpack.c.b16 %v370, %v369
        %v410 = vpack.c.b16 %v372, %v371
        %v411 = vpack.c.b16 %v374, %v373
        %v412 = vpack.c.b16 %v376, %v375
        %v413 = vpack.c.b16 %v378, %v377
        %v414 = vpack.c.b16 %v380, %v379
        %v415 = vpack.c.b16 %v382, %v381
        %v416 = vpack.c.b16 %v384, %v383
        %v417 = vpack.c.b16 %v386, %v385
        %v418 = vpack.c.b16 %v388, %v387
        %v419 = vpack.c.b16 %v390, %v389
        %v420 = vpack.c.b16 %v392, %v391
        %v421 = vpack.c.b16 %v394, %v393
        %v422 = vpack.c.b16 %v396, %v395
        %v423 = vpack.c.b16 %v398, %v397
        %v424 = vpack.c.b16 %v400, %v399
        %449 = vmatprep.subr.bf16.mxu0 0
        %450 = vmatpush1.bf16.msra.mxu0 %v401
        %451 = vmatprep.subr.bf16.mxu0 0
        %452 = vmatpush1.bf16.msra.mxu0 %v402
        %453 = vmatprep.subr.bf16.mxu0 0
        %454 = vmatpush1.bf16.msra.mxu0 %v403
        %455 = vmatprep.subr.bf16.mxu0 0
        %456 = vmatpush1.bf16.msra.mxu0 %v404
        %457 = vmatprep.subr.bf16.mxu0 0
        %458 = vmatpush1.bf16.msra.mxu0 %v405
        %459 = vmatprep.subr.bf16.mxu0 0
        %460 = vmatpush1.bf16.msra.mxu0 %v406
        %461 = vmatprep.subr.bf16.mxu0 0
        %462 = vmatpush1.bf16.msra.mxu0 %v407
        %463 = vmatprep.subr.bf16.mxu0 0
        %464 = vmatpush1.bf16.msra.mxu0 %v408
        %465 = vmatprep.subr.bf16.mxu0 0
        %466 = vmatpush1.bf16.msra.mxu0 %v409
        %467 = vmatprep.subr.bf16.mxu0 0
        %468 = vmatpush1.bf16.msra.mxu0 %v410
        %469 = vmatprep.subr.bf16.mxu0 0
        %470 = vmatpush1.bf16.msra.mxu0 %v411
        %471 = vmatprep.subr.bf16.mxu0 0
        %472 = vmatpush1.bf16.msra.mxu0 %v412
        %473 = vmatprep.subr.bf16.mxu0 0
        %474 = vmatpush1.bf16.msra.mxu0 %v413
        %475 = vmatprep.subr.bf16.mxu0 0
        %476 = vmatpush1.bf16.msra.mxu0 %v414
        %477 = vmatprep.subr.bf16.mxu0 0
        %478 = vmatpush1.bf16.msra.mxu0 %v415
        %479 = vmatprep.subr.bf16.mxu0 0
        %480 = vmatpush1.bf16.msra.mxu0 %v416
        %481 = vmatprep.mubr.bf16.mxu0 %v300
        %482 = vmatmul.mubr.bf16.gmra.mrb[0].mxu0 %v299
        %v483 = vpop.f32.mrb[0].mxu0
        %v484 = vadd.f32 %v287, %v483
        %v485 = vpop.f32.mrb[0].mxu0
        %v486 = vpop.f32.mrb[0].mxu0
        %v487 = vadd.f32 %v287, %v486
        %v488 = vpop.f32.mrb[0].mxu0
        %489 = vdwg.mxu0
        %490 = vmatprep.subr.bf16.mxu0 0
        %491 = vmatpush1.bf16.msra.mxu0 %v417
        %492 = vmatprep.subr.bf16.mxu0 0
        %493 = vmatpush1.bf16.msra.mxu0 %v418
        %494 = vmatprep.subr.bf16.mxu0 0
        %495 = vmatpush1.bf16.msra.mxu0 %v419
        %496 = vmatprep.subr.bf16.mxu0 0
        %497 = vmatpush1.bf16.msra.mxu0 %v420
        %498 = vmatprep.subr.bf16.mxu0 0
        %499 = vmatpush1.bf16.msra.mxu0 %v421
        %500 = vmatprep.subr.bf16.mxu0 0
        %501 = vmatpush1.bf16.msra.mxu0 %v422
        %502 = vmatprep.subr.bf16.mxu0 0
        %503 = vmatpush1.bf16.msra.mxu0 %v423
        %504 = vmatprep.subr.bf16.mxu0 0
        %505 = vmatpush1.bf16.msra.mxu0 %v424
        %506 = vmatprep.subr.bf16.mxu0 0
        %507 = vmatpush1.bf16.msra.mxu0 0
        %508 = vmatprep.subr.bf16.mxu0 0
        %509 = vmatpush1.bf16.msra.mxu0 0
        %510 = vmatprep.subr.bf16.mxu0 0
        %511 = vmatpush1.bf16.msra.mxu0 0
        %512 = vmatprep.subr.bf16.mxu0 0
        %513 = vmatpush1.bf16.msra.mxu0 0
        %514 = vmatprep.subr.bf16.mxu0 0
        %515 = vmatpush1.bf16.msra.mxu0 0
        %516 = vmatprep.subr.bf16.mxu0 0
        %517 = vmatpush1.bf16.msra.mxu0 0
        %518 = vmatprep.subr.bf16.mxu0 0
        %519 = vmatpush1.bf16.msra.mxu0 0
        %520 = vmatprep.subr.bf16.mxu0 0
        %521 = vmatpush1.bf16.msra.mxu0 0
        %522 = vmatprep.mubr.bf16.mxu0 0
        %523 = vmatmul.mubr.bf16.gmra.mrb[0].mxu0 %v301
        %v524 = vpop.f32.mrb[0].mxu0
        %v525 = vadd.f32 %v484, %v524
        %v526 = vpop.f32.mrb[0].mxu0
        %v527 = vpop.f32.mrb[0].mxu0
        %v528 = vadd.f32 %v487, %v527
        %v529 = vpop.f32.mrb[0].mxu0
        %530 = vdwg.mxu0
        %531 = vadd.xlane.f32.xlu0 %v525
        %v532 = vpop.xlane.xlu0 %531
        %533 = vadd.xlane.f32.xlu0 %v528
        %v534 = vpop.xlane.xlu0 %533
        %v535 = vrcp.pop 128.0
        %v536 = vmul.f32 %v532, %v535
        %v537 = vmul.f32 %v534, %v535
        %v538 = vsub.f32 %v525, %v536
        %v539 = vsub.f32 %v528, %v537
        %v540 = vmul.f32 %v538, %v538
        %v541 = vmul.f32 %v539, %v539
        %542 = vadd.xlane.f32.xlu0 %v540
        %v543 = vpop.xlane.xlu0 %542
        %544 = vadd.xlane.f32.xlu0 %v541
        %v545 = vpop.xlane.xlu0 %544
        %v546 = vmul.f32 %v543, %v535
        %v547 = vmul.f32 %v545, %v535
        %v548 = vadd.f32 %v546, 1e-05
        %v549 = vadd.f32 %v547, 1e-05
        %v550 = vrsqrt.pop %v548
        %v551 = vrsqrt.pop %v549
        %v552 = vmul.f32 %v538, %v550
        %v553 = vmul.f32 %v539, %v551
        %v554 = vld [vmem:[%s3] sm:$0x1]
        %v556 = vlaneseq
        %v557 = vshrl.u32 %v556, 7
        %v558 = vsub.s32 0, %v557
        %v559 = vrot.slane %v554, %v558
        %v561 = vmul.f32 %v552, %v559
        %v562 = vmul.f32 %v553, %v559
        %v563 = vld [vmem:[%s4] sm:$0x1]
        %v565 = vlaneseq
        %v566 = vshrl.u32 %v565, 7
        %v567 = vsub.s32 0, %v566
        %v568 = vrot.slane %v563, %v567
        %v570 = vadd.f32 %v561, %v568
        %v571 = vadd.f32 %v562, %v568
        %v572 = vmul.f32 %v570, 0.5
        %v573 = vmul.f32 %v571, 0.5
        %v574 = vmul.f32 %v570, 0.70710677
        %v575 = vmul.f32 %v571, 0.70710677
        %vm576 = vcmp.ge.f32.partialorder %v574, 0.0
        %vm577 = vcmp.ge.f32.partialorder %v575, 0.0
        %v578 = vsel %vm576, 1.0, -1.0
        %v579 = vsel %vm577, 1.0, -1.0
        %v580 = vand.u32 2147483647, %v574
        %v581 = vand.u32 2147483647, %v575
        %v582 = vmul.f32 %v580, 0.3275911
        %v583 = vmul.f32 %v581, 0.3275911
        %v584 = vadd.f32 %v582, 1.0
        %v585 = vadd.f32 %v583, 1.0
        %v586 = vrcp.pop %v584
        %v587 = vmul.f32 1.0, %v586
        %v588 = vrcp.pop %v585
        %v589 = vmul.f32 1.0, %v588
        %v590 = vmul.f32 %v587, 1.0614054
        %v591 = vmul.f32 %v589, 1.0614054
        %v592 = vadd.f32 %v590, -1.4531521
        %v593 = vadd.f32 %v591, -1.4531521
        %v594 = vmul.f32 %v592, %v587
        %v595 = vmul.f32 %v593, %v589
        %v596 = vadd.f32 %v594, 1.4214138
        %v597 = vadd.f32 %v595, 1.4214138
        %v598 = vmul.f32 %v596, %v587
        %v599 = vmul.f32 %v597, %v589
        %v600 = vadd.f32 %v598, -0.28449672
        %v601 = vadd.f32 %v599, -0.28449672
        %v602 = vmul.f32 %v600, %v587
        %v603 = vmul.f32 %v601, %v589
        %v604 = vadd.f32 %v602, 0.2548296
        %v605 = vadd.f32 %v603, 0.2548296
        %v606 = vmul.f32 %v604, %v587
        %v607 = vmul.f32 %v605, %v589
        %v608 = vsub.f32 0.0, %v580
        %v609 = vsub.f32 0.0, %v581
        %v610 = vmul.f32 %v608, %v580
        %v611 = vmul.f32 %v609, %v581
        %v612 = vmul.f32 %v610, 1.442695
        %v613 = vpow.pop %v612
        %v614 = vmul.f32 %v611, 1.442695
        %v615 = vpow.pop %v614
        %v616 = vmul.f32 %v606, %v613
        %v617 = vmul.f32 %v607, %v615
        %v618 = vsub.f32 1.0, %v616
        %v619 = vsub.f32 1.0, %v617
        %v620 = vmul.f32 %v578, %v618
        %v621 = vmul.f32 %v579, %v619
        %v622 = vadd.f32 %v620, 1.0
        %v623 = vadd.f32 %v621, 1.0
        %v624 = vmul.f32 %v572, %v622
        %v625 = vmul.f32 %v573, %v623
        %626 = vst [vmem:[%s220] sm:$0xff] %v624
        %627 = vst [vmem:[%s220 + $0x8] sm:$0xff] %v625
        %s628 = sand.u32 %s137, 1
        %s629 = scalar_lea.sflag [#allocation3], %s628
        %s630 = sand.u32 %s137, 1
        %s631 = smul.addr %s630, 16
        %s632 = scalar_lea.vmem [#allocation2], %s631
        // Predicated region
        $region41: #{dwconv_subsampling.1} parent=39 // pred_check
          %p633 = pneg %p147
        $region42: #{dwconv_subsampling.1} parent=39 // pred_check_branch
          %635 = sbr.rel (%p633) target = $region44
        $region43: #{dwconv_subsampling.1} parent=39 // pred_region
          %s636 = smul.u32 2, %s19
          %s638 = ssub.s32 256, 256
          %639 = vsyncadd %s629, %s638
          %s640 = smul.addr %s636, 128
          %s641 = scalar_lea.hbm %s5, %s640
          %s642 = sshll.u32 %s632, 4
          %s643 = int_to_ptr.vmem [resolvable:$true] %s642
          %648 = dma.vmem_to_hbm [thread:$0]  %s643, 256, %s641, %s629, 128, 128, 8
        $region44: #{dwconv_subsampling.1} parent=39 // pred_fallthru
          _
      $region40: #{dwconv_subsampling.1} parent=5 // pred_fallthru
        _
      %p649 = scmp.le.s32.totalorder 2, %s14
      // Predicated region
      $region45: #{dwconv_subsampling.1} parent=5 // pred_check
        %p650 = pneg %p649
      $region46: #{dwconv_subsampling.1} parent=5 // pred_check_branch
        %652 = sbr.rel (%p650) target = $region48
      $region47: #{dwconv_subsampling.1} parent=5 // pred_region
        %s653 = ssub.s32 %s14, 2
        // Predicated region
        $region49: #{dwconv_subsampling.1} parent=47 // pred_check
          %p654 = pneg %p153
        $region50: #{dwconv_subsampling.1} parent=47 // pred_check_branch
          %656 = sbr.rel (%p654) target = $region52
        $region51: #{dwconv_subsampling.1} parent=47 // pred_region
          %s657 = sand.u32 %s138, 1
          %s658 = scalar_lea.sflag [#allocation3], %s657
          %s659 = sand.u32 %s138, 1
          %s660 = smul.addr %s659, 16
          %s661 = scalar_lea.vmem [#allocation2], %s660
          %662 = dma.done %s658, 256
        $region52: #{dwconv_subsampling.1} parent=47 // pred_fallthru
          _
      $region48: #{dwconv_subsampling.1} parent=5 // pred_fallthru
        _
    $region6: #{dwconv_subsampling.1} parent=1 // loop_footer
      %s18 = sadd.s32 1, %s14
    $region7: #{dwconv_subsampling.1} parent=1 // loop_footer_branch
      %13 = sbr.rel target = $region3
    $region8: #{dwconv_subsampling.1} parent=1 // loop_exit
      _
    %663 = vsyncpa [#allocation3], 1
    %s664 = scalar_lea.sflag [#allocation3], 1
    %665 = vsyncpa %s664, 1

</llo_original>
